<compile_context>
chip_gen: v5e
topology: v5e:2x2
jax: 0.10.0
libtpu: 0.0.40
codegen_flags: <defaults>
</compile_context>

<pallas_src>
import jax
import jax.numpy as jnp
from jax.experimental import pallas as pl
from jax.experimental.pallas import tpu as pltpu

EPS = 1e-12  # F.normalize default eps
EPS_SQ = EPS * EPS


def _netvlad_kernel(x_ref, w_ref, cent_ref, o_ref):
    # x_ref:    (TB, C, S)  batch tile of descriptors, native NCHW-derived layout
    # w_ref:    (K, C)      1x1 conv weight (squeezed), no bias (vladv2=False)
    # cent_ref: (K, C)      cluster centroids
    # o_ref:    (TB, K, C)  normalized VLAD for this batch tile
    x = x_ref[...].astype(jnp.float32)         # (TB, C, S), f32 accumulation
    w = w_ref[...].astype(jnp.float32)         # (K, C)
    cent = cent_ref[...].astype(jnp.float32)   # (K, C)
    TB = x.shape[0]

    # ---- descriptor-wise L2 normalization over C (F.normalize(dim=1)) ----
    #   x / max(||x||, eps) == x * rsqrt(max(||x||^2, eps^2))   (EUP rsqrt)
    sq = jnp.sum(x * x, axis=1, keepdims=True)                   # (TB, 1, S)
    x_n = x * jax.lax.rsqrt(jnp.maximum(sq, EPS_SQ))             # (TB, C, S)

    # ---- 1x1 conv == batched (K, C) @ (C, S) on the MXU (no w.T) ----
    w_b = jnp.broadcast_to(w[None], (TB,) + w.shape)             # (TB, K, C)
    logits = jnp.einsum('bkc,bcs->bks', w_b, x_n,
                        preferred_element_type=jnp.float32)      # (TB, K, S)

    # ---- softmax over clusters K (PyTorch dim=1) ----
    m = jnp.max(logits, axis=1, keepdims=True)                   # (TB, 1, S)
    e = jnp.exp(logits - m)
    assign = e / jnp.sum(e, axis=1, keepdims=True)               # (TB, K, S)

    # ---- VLAD aggregation ----
    # vlad[b,k,c] = sum_s assign[b,k,s] * (x_n[b,c,s] - cent[k,c])
    #            = (assign @ x_n^T)[b,k,c] - cent[k,c] * sum_s assign[b,k,s]
    a_sum = jnp.sum(assign, axis=2, keepdims=True)               # (TB, K, 1)
    vlad = jnp.einsum('bks,bcs->bkc', assign, x_n,
                      preferred_element_type=jnp.float32)        # (TB, K, C)
    vlad = vlad - cent[None] * a_sum                             # (TB, K, C)

    # ---- intra-normalization (L2 over C per cluster row) ----
    r = jnp.sum(vlad * vlad, axis=2, keepdims=True)              # (TB, K, 1)
    vlad = vlad * jax.lax.rsqrt(jnp.maximum(r, EPS_SQ))

    # ---- final L2 normalization over the flattened (K*C,) vector ----
    # Kept as the exact reduce (not the 1/sqrt(K) shortcut) so eps-clamped
    # degenerate rows match the PyTorch reference.
    g = jnp.sum(jnp.sum(vlad * vlad, axis=2, keepdims=True),
                axis=1, keepdims=True)                           # (TB, 1, 1)
    vlad = vlad * jax.lax.rsqrt(jnp.maximum(g, EPS_SQ))

    o_ref[...] = vlad.astype(o_ref.dtype)


def netvlad_forward(x_nchw, conv_weight, centroids, *, batch_tile=None):
    """x_nchw: (N, C, H, W); conv_weight: (K, C, 1, 1); centroids: (K, C)."""
    N, C, H, W = x_nchw.shape
    K = centroids.shape[0]
    S = H * W

    # Free reshape only — no HBM transpose pass.
    x_ncs = x_nchw.reshape(N, C, S)
    w_kc = conv_weight.reshape(K, C)

    if batch_tile is None:
        # Size the batch tile against a conservative VMEM budget (generous
        # ~8x per-element footprint estimate covers the double-buffered
        # input block plus f32 intermediates on all of v5e/v6e/v7x).
        per_elem_bytes = 8 * C * S * 4
        batch_tile = max(1, min(N, (8 * 1024 * 1024) // per_elem_bytes))
    TB = int(batch_tile)
    grid = (pl.cdiv(N, TB),)

    vlad = pl.pallas_call(
        _netvlad_kernel,
        out_shape=jax.ShapeDtypeStruct((N, K, C), x_nchw.dtype),
        grid=grid,
        in_specs=[
            pl.BlockSpec((TB, C, S), lambda n: (n, 0, 0)),
            pl.BlockSpec((K, C), lambda n: (0, 0)),
            pl.BlockSpec((K, C), lambda n: (0, 0)),
        ],
        out_specs=pl.BlockSpec((TB, K, C), lambda n: (n, 0, 0)),
        compiler_params=pltpu.CompilerParams(
            dimension_semantics=("parallel",),
            vmem_limit_bytes=32 * 1024 * 1024,
        ),
    )(x_ncs, w_kc, centroids)

    return vlad.reshape(N, K * C)


def _reference_forward(x_nchw, conv_weight, centroids):
    """Plain-JAX reference mirroring the PyTorch module (for validation)."""
    N, C, H, W = x_nchw.shape
    K = centroids.shape[0]
    x = x_nchw / jnp.maximum(
        jnp.sqrt(jnp.sum(x_nchw * x_nchw, axis=1, keepdims=True)), EPS)
    w = conv_weight.reshape(K, C)
    soft = jnp.einsum('kc,nchw->nkhw', w, x).reshape(N, K, -1)
    soft = jax.nn.softmax(soft, axis=1)                     # (N, K, S)
    x_flat = x.reshape(N, C, -1)                            # (N, C, S)
    vlad = jnp.einsum('nks,ncs->nkc', soft, x_flat) \
        - centroids[None] * jnp.sum(soft, axis=-1)[:, :, None]
    vlad = vlad / jnp.maximum(
        jnp.sqrt(jnp.sum(vlad * vlad, axis=2, keepdims=True)), EPS)
    vlad = vlad.reshape(N, -1)
    vlad = vlad / jnp.maximum(
        jnp.sqrt(jnp.sum(vlad * vlad, axis=1, keepdims=True)), EPS)
    return vlad


if __name__ == "__main__":
    # Small, TPU-friendly shapes consistent with the module's forward:
    # batch=2, dim(C)=128, num_clusters(K)=8, spatial 4x4 (S=16).
    N, C, H, W = 2, 128, 4, 4
    K = 8

    key = jax.random.PRNGKey(0)
    kx, kw, kc = jax.random.split(key, 3)

    x = jax.random.normal(kx, (N, C, H, W), dtype=jnp.float32)
    # Deterministic synthetic parameters (no checkpoint load):
    # conv: Conv2d(dim, K, kernel_size=1, bias=False) -> weight (K, C, 1, 1)
    conv_weight = (jax.random.uniform(kw, (K, C, 1, 1), dtype=jnp.float32)
                   - 0.5) * 0.2
    # centroids: torch.rand(K, dim) -> uniform [0, 1)
    centroids = jax.random.uniform(kc, (K, C), dtype=jnp.float32)

    out = jax.block_until_ready(netvlad_forward(x, conv_weight, centroids))
    ref = jax.block_until_ready(_reference_forward(x, conv_weight, centroids))

    assert out.shape == (N, K * C)
    assert jnp.allclose(out, ref, atol=2e-5, rtol=2e-5), \
        float(jnp.max(jnp.abs(out - ref)))

    print("KERNEL_OK")
</pallas_src>

<mosaic_0001>
module attributes {stable_mosaic.version = 11 : i64} {
  func.func @_netvlad_kernel(%arg0: i32, %arg1: memref<2x128x16xf32, #tpu.memory_space<vmem>>, %arg2: memref<8x128xf32, #tpu.memory_space<vmem>>, %arg3: memref<8x128xf32, #tpu.memory_space<vmem>>, %arg4: memref<2x8x128xf32, #tpu.memory_space<vmem>>) attributes {dimension_semantics = [#tpu.dimension_semantics<parallel>], iteration_bounds = array<i64: 1>, scalar_prefetch = 0 : i64, scratch_operands = 0 : i64, tpu.core_type = #tpu.core_type<tc>, window_params = [{transform_indices = @transform_0, window_bounds = array<i64: 2, 128, 16>}, {pipeline_mode = #tpu.pipeline_mode<synchronous>, transform_indices = @transform_1, window_bounds = array<i64: 8, 128>}, {pipeline_mode = #tpu.pipeline_mode<synchronous>, transform_indices = @transform_2, window_bounds = array<i64: 8, 128>}, {transform_indices = @transform_3, window_bounds = array<i64: 2, 8, 128>}]} {
    %c0 = arith.constant 0 : index
    %c0_0 = arith.constant 0 : index
    %c0_1 = arith.constant 0 : index
    %0 = vector.load %arg1[%c0, %c0_0, %c0_1] : memref<2x128x16xf32, #tpu.memory_space<vmem>>, vector<2x128x16xf32>
    %c0_2 = arith.constant 0 : index
    %c0_3 = arith.constant 0 : index
    %1 = vector.load %arg2[%c0_2, %c0_3] : memref<8x128xf32, #tpu.memory_space<vmem>>, vector<8x128xf32>
    %c0_4 = arith.constant 0 : index
    %c0_5 = arith.constant 0 : index
    %2 = vector.load %arg3[%c0_4, %c0_5] : memref<8x128xf32, #tpu.memory_space<vmem>>, vector<8x128xf32>
    %3 = arith.mulf %0, %0 : vector<2x128x16xf32>
    %cst = arith.constant dense<0.000000e+00> : vector<2x16xf32>
    %4 = vector.multi_reduction <add>, %3, %cst [1] : vector<2x128x16xf32> to vector<2x16xf32>
    %5 = vector.shape_cast %4 : vector<2x16xf32> to vector<2x1x16xf32>
    %cst_6 = arith.constant 1.000000e-24 : f32
    %6 = vector.broadcast %cst_6 : f32 to vector<2x1x16xf32>
    %7 = arith.maximumf %5, %6 : vector<2x1x16xf32>
    %8 = math.rsqrt %7 : vector<2x1x16xf32>
    %9 = vector.broadcast %8 : vector<2x1x16xf32> to vector<2x128x16xf32>
    %10 = arith.mulf %0, %9 : vector<2x128x16xf32>
    %11 = vector.shape_cast %1 : vector<8x128xf32> to vector<1x8x128xf32>
    %12 = vector.shape_cast %11 : vector<1x8x128xf32> to vector<1x8x128xf32>
    %13 = vector.broadcast %12 : vector<1x8x128xf32> to vector<2x8x128xf32>
    "tpu.trace_start"() <{level = 10 : i32, message = "bkc,bcs->bks"}> : () -> ()
    %cst_7 = arith.constant dense<0.000000e+00> : vector<2x8x16xf32>
    %14 = tpu.matmul %13, %10, %cst_7 {dimension_numbers = #tpu.dot_dimension_numbers<[2], [1], [1], [2], [0, 0, 0, 1, 1, 2], [0], [0]>} : vector<2x8x128xf32>, vector<2x128x16xf32>, vector<2x8x16xf32> -> vector<2x8x16xf32>
    "tpu.trace_stop"() : () -> ()
    %cst_8 = arith.constant dense<0xFF800000> : vector<2x16xf32>
    %15 = vector.multi_reduction <maximumf>, %14, %cst_8 [1] : vector<2x8x16xf32> to vector<2x16xf32>
    %16 = vector.shape_cast %15 : vector<2x16xf32> to vector<2x1x16xf32>
    %17 = vector.broadcast %16 : vector<2x1x16xf32> to vector<2x8x16xf32>
    %18 = arith.subf %14, %17 : vector<2x8x16xf32>
    %19 = math.exp %18 : vector<2x8x16xf32>
    %cst_9 = arith.constant dense<0.000000e+00> : vector<2x16xf32>
    %20 = vector.multi_reduction <add>, %19, %cst_9 [1] : vector<2x8x16xf32> to vector<2x16xf32>
    %21 = vector.shape_cast %20 : vector<2x16xf32> to vector<2x1x16xf32>
    %22 = vector.broadcast %21 : vector<2x1x16xf32> to vector<2x8x16xf32>
    %23 = arith.divf %19, %22 : vector<2x8x16xf32>
    %cst_10 = arith.constant dense<0.000000e+00> : vector<2x8xf32>
    %24 = vector.multi_reduction <add>, %23, %cst_10 [2] : vector<2x8x16xf32> to vector<2x8xf32>
    %25 = vector.shape_cast %24 : vector<2x8xf32> to vector<2x8x1xf32>
    "tpu.trace_start"() <{level = 10 : i32, message = "bks,bcs->bkc"}> : () -> ()
    %cst_11 = arith.constant dense<0.000000e+00> : vector<2x8x128xf32>
    %26 = tpu.matmul %23, %10, %cst_11 {dimension_numbers = #tpu.dot_dimension_numbers<[2], [2], [1], [1], [0, 0, 0, 1, 1, 1], [0], [0]>} : vector<2x8x16xf32>, vector<2x128x16xf32>, vector<2x8x128xf32> -> vector<2x8x128xf32>
    "tpu.trace_stop"() : () -> ()
    %27 = vector.shape_cast %2 : vector<8x128xf32> to vector<1x8x128xf32>
    %28 = vector.broadcast %27 : vector<1x8x128xf32> to vector<2x8x128xf32>
    %29 = vector.broadcast %25 : vector<2x8x1xf32> to vector<2x8x128xf32>
    %30 = arith.mulf %28, %29 : vector<2x8x128xf32>
    %31 = arith.subf %26, %30 : vector<2x8x128xf32>
    %32 = arith.mulf %31, %31 : vector<2x8x128xf32>
    %cst_12 = arith.constant dense<0.000000e+00> : vector<2x8xf32>
    %33 = vector.multi_reduction <add>, %32, %cst_12 [2] : vector<2x8x128xf32> to vector<2x8xf32>
    %34 = vector.shape_cast %33 : vector<2x8xf32> to vector<2x8x1xf32>
    %cst_13 = arith.constant 1.000000e-24 : f32
    %35 = vector.broadcast %cst_13 : f32 to vector<2x8x1xf32>
    %36 = arith.maximumf %34, %35 : vector<2x8x1xf32>
    %37 = math.rsqrt %36 : vector<2x8x1xf32>
    %38 = vector.broadcast %37 : vector<2x8x1xf32> to vector<2x8x128xf32>
    %39 = arith.mulf %31, %38 : vector<2x8x128xf32>
    %40 = arith.mulf %39, %39 : vector<2x8x128xf32>
    %cst_14 = arith.constant dense<0.000000e+00> : vector<2x8xf32>
    %41 = vector.multi_reduction <add>, %40, %cst_14 [2] : vector<2x8x128xf32> to vector<2x8xf32>
    %42 = vector.shape_cast %41 : vector<2x8xf32> to vector<2x8x1xf32>
    %cst_15 = arith.constant dense<0.000000e+00> : vector<2x1xf32>
    %43 = vector.multi_reduction <add>, %42, %cst_15 [1] : vector<2x8x1xf32> to vector<2x1xf32>
    %44 = vector.shape_cast %43 : vector<2x1xf32> to vector<2x1x1xf32>
    %cst_16 = arith.constant 1.000000e-24 : f32
    %45 = vector.broadcast %cst_16 : f32 to vector<2x1x1xf32>
    %46 = arith.maximumf %44, %45 : vector<2x1x1xf32>
    %47 = math.rsqrt %46 : vector<2x1x1xf32>
    %48 = vector.broadcast %47 : vector<2x1x1xf32> to vector<2x8x128xf32>
    %49 = arith.mulf %39, %48 : vector<2x8x128xf32>
    %c0_17 = arith.constant 0 : index
    %c0_18 = arith.constant 0 : index
    %c0_19 = arith.constant 0 : index
    %50 = vector.load %arg4[%c0_17, %c0_18, %c0_19] : memref<2x8x128xf32, #tpu.memory_space<vmem>>, vector<2x8x128xf32>
    tpu.vector_store %arg4[%c0_17, %c0_18, %c0_19], %49 {strides = array<i32>} : memref<2x8x128xf32, #tpu.memory_space<vmem>>, vector<2x8x128xf32>,
    return
  }
  func.func @transform_0(%arg0: i32) -> (i32, i32, i32) {
    %c0_i32 = arith.constant 0 : i32
    %c0_i32_0 = arith.constant 0 : i32
    %c0_i32_1 = arith.constant 0 : i32
    return %arg0, %c0_i32, %c0_i32_0 : i32, i32, i32
  }
  func.func @transform_1(%arg0: i32) -> (i32, i32) {
    %c0_i32 = arith.constant 0 : i32
    %c0_i32_0 = arith.constant 0 : i32
    %c0_i32_1 = arith.constant 0 : i32
    return %c0_i32, %c0_i32_0 : i32, i32
  }
  func.func @transform_2(%arg0: i32) -> (i32, i32) {
    %c0_i32 = arith.constant 0 : i32
    %c0_i32_0 = arith.constant 0 : i32
    %c0_i32_1 = arith.constant 0 : i32
    return %c0_i32, %c0_i32_0 : i32, i32
  }
  func.func @transform_3(%arg0: i32) -> (i32, i32, i32) {
    %c0_i32 = arith.constant 0 : i32
    %c0_i32_0 = arith.constant 0 : i32
    %c0_i32_1 = arith.constant 0 : i32
    return %arg0, %c0_i32, %c0_i32_0 : i32, i32, i32
  }
}

</mosaic_0001>

<llo_original>
// kernel: tpu_custom_call.1
$region0: #{tpu_custom_call.1}
  #allocation0 [shape = 'u32[]', space=smem, size = 0x4, offset = 0x4, fixed_abs, tag = 'smem constant byte address 0x4 - core index']
  #allocation1 [shape = 'u32[72,128]{1,0:T(1,128)}', space=vmem, size = 0x9000, scoped, tag = 'internal scratch']
  %s0 = inlined_call_operand.vmem [shape: f32[2,128,16], index: 0, kind: input, shape index: {}]
  %s1 = inlined_call_operand.vmem [shape: f32[8,128], index: 1, kind: input, shape index: {}]
  %s2 = inlined_call_operand.vmem [shape: f32[8,128], index: 2, kind: input, shape index: {}]
  %s3 = inlined_call_operand.hbm [shape: f32[2,8,128], index: 3, kind: output, shape index: {}]
  %s4 = sld [smem:[#allocation0]]
  $region22: #{tpu_custom_call.1} parent=0
    _
  %s6 = ssub.s32 1, %s4
  %s7 = scalar_select 0, %s6, %s4
  $region1: #{tpu_custom_call.1} parent=0
    #allocation2 [shape = 'u8[8192]{0}', space=vmem, size = 0x2000, scoped, tag = 'output window, operand 0, single buffered']
    #allocation3 [shape = 's32[1]{0}', space=sflag, size = 0x4, scoped, tag = 'scoped memory for tpu_custom_call.1']
    %8 = vsyncpa [#allocation3], 0
    // Predicated region
    $region2: #{tpu_custom_call.1} parent=1 // pred_check
      _
    $region3: #{tpu_custom_call.1} parent=1 // pred_check_branch
      %10 = sbr.rel (0) target = $region5
    $region4: #{tpu_custom_call.1} parent=1 // pred_region
      _
    $region5: #{tpu_custom_call.1} parent=1 // pred_fallthru
      _
    // Predicated region
    $region6: #{tpu_custom_call.1} parent=1 // pred_check
      _
    $region7: #{tpu_custom_call.1} parent=1 // pred_check_branch
      %12 = sbr.rel (0) target = $region9
    $region8: #{tpu_custom_call.1} parent=1 // pred_region
      _
    $region9: #{tpu_custom_call.1} parent=1 // pred_fallthru
      _
    // Predicated region
    $region10: #{tpu_custom_call.1} parent=1 // pred_check
      _
    $region11: #{tpu_custom_call.1} parent=1 // pred_check_branch
      %14 = sbr.rel (0) target = $region13
    $region12: #{tpu_custom_call.1} parent=1 // pred_region
      _
    $region13: #{tpu_custom_call.1} parent=1 // pred_fallthru
      _
    %v15 = vld [vmem:[%s0] sm:$0xff]
    %v16 = vld [vmem:[%s0 + $0x8] sm:$0xff]
    %v17 = vld [vmem:[%s0 + $0x10] sm:$0xff]
    %v18 = vld [vmem:[%s0 + $0x18] sm:$0xff]
    %v19 = vld [vmem:[%s0 + $0x20] sm:$0xff]
    %v20 = vld [vmem:[%s0 + $0x28] sm:$0xff]
    %v21 = vld [vmem:[%s0 + $0x30] sm:$0xff]
    %v22 = vld [vmem:[%s0 + $0x38] sm:$0xff]
    %v23 = vld [vmem:[%s0 + $0x40] sm:$0xff]
    %v24 = vld [vmem:[%s0 + $0x48] sm:$0xff]
    %v25 = vld [vmem:[%s0 + $0x50] sm:$0xff]
    %v26 = vld [vmem:[%s0 + $0x58] sm:$0xff]
    %v27 = vld [vmem:[%s0 + $0x60] sm:$0xff]
    %v28 = vld [vmem:[%s0 + $0x68] sm:$0xff]
    %v29 = vld [vmem:[%s0 + $0x70] sm:$0xff]
    %v30 = vld [vmem:[%s0 + $0x78] sm:$0xff]
    %v31 = vld [vmem:[%s0 + $0x80] sm:$0xff]
    %v32 = vld [vmem:[%s0 + $0x88] sm:$0xff]
    %v33 = vld [vmem:[%s0 + $0x90] sm:$0xff]
    %v34 = vld [vmem:[%s0 + $0x98] sm:$0xff]
    %v35 = vld [vmem:[%s0 + $0xa0] sm:$0xff]
    %v36 = vld [vmem:[%s0 + $0xa8] sm:$0xff]
    %v37 = vld [vmem:[%s0 + $0xb0] sm:$0xff]
    %v38 = vld [vmem:[%s0 + $0xb8] sm:$0xff]
    %v39 = vld [vmem:[%s0 + $0xc0] sm:$0xff]
    %v40 = vld [vmem:[%s0 + $0xc8] sm:$0xff]
    %v41 = vld [vmem:[%s0 + $0xd0] sm:$0xff]
    %v42 = vld [vmem:[%s0 + $0xd8] sm:$0xff]
    %v43 = vld [vmem:[%s0 + $0xe0] sm:$0xff]
    %v44 = vld [vmem:[%s0 + $0xe8] sm:$0xff]
    %v45 = vld [vmem:[%s0 + $0xf0] sm:$0xff]
    %v46 = vld [vmem:[%s0 + $0xf8] sm:$0xff]
    %v47 = vld [vmem:[%s1] sm:$0xff]
    %v48 = vld [vmem:[%s2] sm:$0xff]
    %v49 = vmul.f32 %v15, %v15
    %v50 = vmul.f32 %v16, %v16
    %v51 = vmul.f32 %v17, %v17
    %v52 = vmul.f32 %v18, %v18
    %v53 = vmul.f32 %v19, %v19
    %v54 = vmul.f32 %v20, %v20
    %v55 = vmul.f32 %v21, %v21
    %v56 = vmul.f32 %v22, %v22
    %v57 = vmul.f32 %v23, %v23
    %v58 = vmul.f32 %v24, %v24
    %v59 = vmul.f32 %v25, %v25
    %v60 = vmul.f32 %v26, %v26
    %v61 = vmul.f32 %v27, %v27
    %v62 = vmul.f32 %v28, %v28
    %v63 = vmul.f32 %v29, %v29
    %v64 = vmul.f32 %v30, %v30
    %v65 = vmul.f32 %v31, %v31
    %v66 = vmul.f32 %v32, %v32
    %v67 = vmul.f32 %v33, %v33
    %v68 = vmul.f32 %v34, %v34
    %v69 = vmul.f32 %v35, %v35
    %v70 = vmul.f32 %v36, %v36
    %v71 = vmul.f32 %v37, %v37
    %v72 = vmul.f32 %v38, %v38
    %v73 = vmul.f32 %v39, %v39
    %v74 = vmul.f32 %v40, %v40
    %v75 = vmul.f32 %v41, %v41
    %v76 = vmul.f32 %v42, %v42
    %v77 = vmul.f32 %v43, %v43
    %v78 = vmul.f32 %v44, %v44
    %v79 = vmul.f32 %v45, %v45
    %v80 = vmul.f32 %v46, %v46
    %vm81 = vcmask 130048
    %v82 = vsel %vm81, %v49, 0.0
    %v83 = vsel %vm81, %v50, 0.0
    %v84 = vadd.f32 %v82, %v83
    %v85 = vsel %vm81, %v51, 0.0
    %v86 = vadd.f32 %v84, %v85
    %v87 = vsel %vm81, %v52, 0.0
    %v88 = vadd.f32 %v86, %v87
    %v89 = vsel %vm81, %v53, 0.0
    %v90 = vadd.f32 %v88, %v89
    %v91 = vsel %vm81, %v54, 0.0
    %v92 = vadd.f32 %v90, %v91
    %v93 = vsel %vm81, %v55, 0.0
    %v94 = vadd.f32 %v92, %v93
    %v95 = vsel %vm81, %v56, 0.0
    %v96 = vadd.f32 %v94, %v95
    %v97 = vsel %vm81, %v57, 0.0
    %v98 = vadd.f32 %v96, %v97
    %v99 = vsel %vm81, %v58, 0.0
    %v100 = vadd.f32 %v98, %v99
    %v101 = vsel %vm81, %v59, 0.0
    %v102 = vadd.f32 %v100, %v101
    %v103 = vsel %vm81, %v60, 0.0
    %v104 = vadd.f32 %v102, %v103
    %v105 = vsel %vm81, %v61, 0.0
    %v106 = vadd.f32 %v104, %v105
    %v107 = vsel %vm81, %v62, 0.0
    %v108 = vadd.f32 %v106, %v107
    %v109 = vsel %vm81, %v63, 0.0
    %v110 = vadd.f32 %v108, %v109
    %v111 = vsel %vm81, %v64, 0.0
    %v112 = vadd.f32 %v110, %v111
    %v113 = vrot.slane %v112, 4
    %v114 = vadd.f32 %v112, %v113
    %v115 = vrot.slane %v114, 2
    %v116 = vadd.f32 %v114, %v115
    %v117 = vrot.slane %v116, 1
    %v118 = vadd.f32 %v116, %v117
    %v119 = vsel %vm81, %v65, 0.0
    %v120 = vsel %vm81, %v66, 0.0
    %v121 = vadd.f32 %v119, %v120
    %v122 = vsel %vm81, %v67, 0.0
    %v123 = vadd.f32 %v121, %v122
    %v124 = vsel %vm81, %v68, 0.0
    %v125 = vadd.f32 %v123, %v124
    %v126 = vsel %vm81, %v69, 0.0
    %v127 = vadd.f32 %v125, %v126
    %v128 = vsel %vm81, %v70, 0.0
    %v129 = vadd.f32 %v127, %v128
    %v130 = vsel %vm81, %v71, 0.0
    %v131 = vadd.f32 %v129, %v130
    %v132 = vsel %vm81, %v72, 0.0
    %v133 = vadd.f32 %v131, %v132
    %v134 = vsel %vm81, %v73, 0.0
    %v135 = vadd.f32 %v133, %v134
    %v136 = vsel %vm81, %v74, 0.0
    %v137 = vadd.f32 %v135, %v136
    %v138 = vsel %vm81, %v75, 0.0
    %v139 = vadd.f32 %v137, %v138
    %v140 = vsel %vm81, %v76, 0.0
    %v141 = vadd.f32 %v139, %v140
    %v142 = vsel %vm81, %v77, 0.0
    %v143 = vadd.f32 %v141, %v142
    %v144 = vsel %vm81, %v78, 0.0
    %v145 = vadd.f32 %v143, %v144
    %v146 = vsel %vm81, %v79, 0.0
    %v147 = vadd.f32 %v145, %v146
    %v148 = vsel %vm81, %v80, 0.0
    %v149 = vadd.f32 %v147, %v148
    %v150 = vrot.slane %v149, 4
    %v151 = vadd.f32 %v149, %v150
    %v152 = vrot.slane %v151, 2
    %v153 = vadd.f32 %v151, %v152
    %v154 = vrot.slane %v153, 1
    %v155 = vadd.f32 %v153, %v154
    %v156 = vmax.f32 %v118, 1e-24
    %v157 = vmax.f32 %v155, 1e-24
    %v158 = vrsqrt.pop %v156
    %v159 = vmul.f32 %v158, %v156
    %v160 = vmul.f32 %v159, %v158
    %v161 = vmul.f32 0.5, %v160
    %v162 = vsub.f32 1.5, %v161
    %v163 = vmul.f32 %v158, %v162
    %vm164 = vweird.f32 %v156
    %vm165 = vweird.f32 %v158
    %vm166 = vmor %vm164, %vm165
    %v167 = vsel %vm166, %v158, %v163
    %v168 = vrsqrt.pop %v157
    %v169 = vmul.f32 %v168, %v157
    %v170 = vmul.f32 %v169, %v168
    %v171 = vmul.f32 0.5, %v170
    %v172 = vsub.f32 1.5, %v171
    %v173 = vmul.f32 %v168, %v172
    %vm174 = vweird.f32 %v157
    %vm175 = vweird.f32 %v168
    %vm176 = vmor %vm174, %vm175
    %v177 = vsel %vm176, %v168, %v173
    %v178 = vmul.f32 %v15, %v167
    %v179 = vmul.f32 %v16, %v167
    %v180 = vmul.f32 %v17, %v167
    %v181 = vmul.f32 %v18, %v167
    %v182 = vmul.f32 %v19, %v167
    %v183 = vmul.f32 %v20, %v167
    %v184 = vmul.f32 %v21, %v167
    %v185 = vmul.f32 %v22, %v167
    %v186 = vmul.f32 %v23, %v167
    %v187 = vmul.f32 %v24, %v167
    %v188 = vmul.f32 %v25, %v167
    %v189 = vmul.f32 %v26, %v167
    %v190 = vmul.f32 %v27, %v167
    %v191 = vmul.f32 %v28, %v167
    %v192 = vmul.f32 %v29, %v167
    %v193 = vmul.f32 %v30, %v167
    %v194 = vmul.f32 %v31, %v177
    %v195 = vmul.f32 %v32, %v177
    %v196 = vmul.f32 %v33, %v177
    %v197 = vmul.f32 %v34, %v177
    %v198 = vmul.f32 %v35, %v177
    %v199 = vmul.f32 %v36, %v177
    %v200 = vmul.f32 %v37, %v177
    %v201 = vmul.f32 %v38, %v177
    %v202 = vmul.f32 %v39, %v177
    %v203 = vmul.f32 %v40, %v177
    %v204 = vmul.f32 %v41, %v177
    %v205 = vmul.f32 %v42, %v177
    %v206 = vmul.f32 %v43, %v177
    %v207 = vmul.f32 %v44, %v177
    %v208 = vmul.f32 %v45, %v177
    %v209 = vmul.f32 %v46, %v177
    %210 = vmatpush.msra.mxu0 %v193
    %211 = vmatpush.msra.mxu0 %v192
    %212 = vmatpush.msra.mxu0 %v191
    %213 = vmatpush.msra.mxu0 %v190
    %214 = vmatpush.msra.mxu0 %v189
    %215 = vmatpush.msra.mxu0 %v188
    %216 = vmatpush.msra.mxu0 %v187
    %217 = vmatpush.msra.mxu0 %v186
    %218 = vmatpush.msra.mxu0 %v185
    %219 = vmatpush.msra.mxu0 %v184
    %220 = vmatpush.msra.mxu0 %v183
    %221 = vmatpush.msra.mxu0 %v182
    %222 = vmatpush.msra.mxu0 %v181
    %223 = vmatpush.msra.mxu0 %v180
    %224 = vmatpush.msra.mxu0 %v179
    %225 = vmatpush.msra.mxu0 %v178
    %226 = vmatmul.f32.gmra.mxu0 %v47
    %v227 = vpop.f32.mrf.mxu0
    %v228 = vadd.f32 0.0, %v227
    %229 = vdwg.mxu0
    %230 = vmatpush.msra.mxu0 %v209
    %231 = vmatpush.msra.mxu0 %v208
    %232 = vmatpush.msra.mxu0 %v207
    %233 = vmatpush.msra.mxu0 %v206
    %234 = vmatpush.msra.mxu0 %v205
    %235 = vmatpush.msra.mxu0 %v204
    %236 = vmatpush.msra.mxu0 %v203
    %237 = vmatpush.msra.mxu0 %v202
    %238 = vmatpush.msra.mxu0 %v201
    %239 = vmatpush.msra.mxu0 %v200
    %240 = vmatpush.msra.mxu0 %v199
    %241 = vmatpush.msra.mxu0 %v198
    %242 = vmatpush.msra.mxu0 %v197
    %243 = vmatpush.msra.mxu0 %v196
    %244 = vmatpush.msra.mxu0 %v195
    %245 = vmatpush.msra.mxu0 %v194
    %246 = vmatmul.f32.gmra.mxu0 %v47
    %v247 = vpop.f32.mrf.mxu0
    %v248 = vadd.f32 0.0, %v247
    %249 = vdwg.mxu0
    %v250 = vsel %vm81, %v228, -inf
    %v251 = vrot.slane %v250, 4
    %v252 = vmax.f32 %v250, %v251
    %v253 = vrot.slane %v252, 2
    %v254 = vmax.f32 %v252, %v253
    %v255 = vrot.slane %v254, 1
    %v256 = vmax.f32 %v254, %v255
    %v257 = vsel %vm81, %v248, -inf
    %v258 = vrot.slane %v257, 4
    %v259 = vmax.f32 %v257, %v258
    %v260 = vrot.slane %v259, 2
    %v261 = vmax.f32 %v259, %v260
    %v262 = vrot.slane %v261, 1
    %v263 = vmax.f32 %v261, %v262
    %v264 = vsub.f32 %v228, %v256
    %v265 = vsub.f32 %v248, %v263
    %v266 = vmul.f32 %v264, 1.442695
    %v267 = vpow.pop %v266
    %v268 = vmul.f32 %v265, 1.442695
    %v269 = vpow.pop %v268
    %v270 = vsel %vm81, %v267, 0.0
    %v271 = vrot.slane %v270, 4
    %v272 = vadd.f32 %v270, %v271
    %v273 = vrot.slane %v272, 2
    %v274 = vadd.f32 %v272, %v273
    %v275 = vrot.slane %v274, 1
    %v276 = vadd.f32 %v274, %v275
    %v277 = vsel %vm81, %v269, 0.0
    %v278 = vrot.slane %v277, 4
    %v279 = vadd.f32 %v277, %v278
    %v280 = vrot.slane %v279, 2
    %v281 = vadd.f32 %v279, %v280
    %v282 = vrot.slane %v281, 1
    %v283 = vadd.f32 %v281, %v282
    %v284 = vrcp.pop %v276
    %v285 = vmul.f32 %v276, %v284
    %v286 = vsub.f32 1.0, %v285
    %v287 = vmul.f32 %v284, %v286
    %v288 = vadd.f32 %v284, %v287
    %vm289 = vweird.f32 %v276
    %vm290 = vweird.f32 %v284
    %vm291 = vmor %vm289, %vm290
    %v292 = vsel %vm291, %v284, %v288
    %v293 = vand.u32 2147483647, %v276
    %vm294 = vcmp.eq.f32.partialorder %v293, 8.507059e+37
    %v295 = vand.u32 %v276, 2147483648
    %v296 = vor.u32 1.1754944e-38, %v295
    %v297 = vsel %vm294, %v296, %v292
    %v298 = vmul.f32 %v267, %v297
    %v299 = vrcp.pop %v283
    %v300 = vmul.f32 %v283, %v299
    %v301 = vsub.f32 1.0, %v300
    %v302 = vmul.f32 %v299, %v301
    %v303 = vadd.f32 %v299, %v302
    %vm304 = vweird.f32 %v283
    %vm305 = vweird.f32 %v299
    %vm306 = vmor %vm304, %vm305
    %v307 = vsel %vm306, %v299, %v303
    %v308 = vand.u32 2147483647, %v283
    %vm309 = vcmp.eq.f32.partialorder %v308, 8.507059e+37
    %v310 = vand.u32 %v283, 2147483648
    %v311 = vor.u32 1.1754944e-38, %v310
    %v312 = vsel %vm309, %v311, %v307
    %v313 = vmul.f32 %v269, %v312
    %v314 = vsel %vm81, %v298, 0.0
    %315 = vadd.xlane.f32.xlu0 %v314
    %v316 = vpop.xlane.xlu0 %315
    %v317 = vsel %vm81, %v313, 0.0
    %318 = vadd.xlane.f32.xlu0 %v317
    %v319 = vpop.xlane.xlu0 %318
    %v321 = vsel %vm81, %v298, 0
    %v324 = vsel %vm81, %v178, 0
    %v327 = vsel %vm81, %v179, 0
    %v330 = vsel %vm81, %v180, 0
    %v333 = vsel %vm81, %v181, 0
    %v336 = vsel %vm81, %v182, 0
    %v339 = vsel %vm81, %v183, 0
    %v342 = vsel %vm81, %v184, 0
    %v345 = vsel %vm81, %v185, 0
    %v348 = vsel %vm81, %v186, 0
    %v351 = vsel %vm81, %v187, 0
    %v354 = vsel %vm81, %v188, 0
    %v357 = vsel %vm81, %v189, 0
    %v360 = vsel %vm81, %v190, 0
    %v363 = vsel %vm81, %v191, 0
    %v366 = vsel %vm81, %v192, 0
    %v369 = vsel %vm81, %v193, 0
    %371 = vmatpush.xpose.msra.mxu0 %v369
    %372 = vmatpush.xpose.msra.mxu0 %v366
    %373 = vmatpush.xpose.msra.mxu0 %v363
    %374 = vmatpush.xpose.msra.mxu0 %v360
    %375 = vmatpush.xpose.msra.mxu0 %v357
    %376 = vmatpush.xpose.msra.mxu0 %v354
    %377 = vmatpush.xpose.msra.mxu0 %v351
    %378 = vmatpush.xpose.msra.mxu0 %v348
    %379 = vmatpush.xpose.msra.mxu0 %v345
    %380 = vmatpush.xpose.msra.mxu0 %v342
    %381 = vmatpush.xpose.msra.mxu0 %v339
    %382 = vmatpush.xpose.msra.mxu0 %v336
    %383 = vmatpush.xpose.msra.mxu0 %v333
    %384 = vmatpush.xpose.msra.mxu0 %v330
    %385 = vmatpush.xpose.msra.mxu0 %v327
    %386 = vmatpush.xpose.msra.mxu0 %v324
    %387 = vmatmul.f32.gmra.mxu0 %v321
    %v388 = vpop.f32.mrf.mxu0
    %v389 = vadd.f32 0.0, %v388
    %390 = vdwg.mxu0
    %v392 = vsel %vm81, %v313, 0
    %v395 = vsel %vm81, %v194, 0
    %v398 = vsel %vm81, %v195, 0
    %v401 = vsel %vm81, %v196, 0
    %v404 = vsel %vm81, %v197, 0
    %v407 = vsel %vm81, %v198, 0
    %v410 = vsel %vm81, %v199, 0
    %v413 = vsel %vm81, %v200, 0
    %v416 = vsel %vm81, %v201, 0
    %v419 = vsel %vm81, %v202, 0
    %v422 = vsel %vm81, %v203, 0
    %v425 = vsel %vm81, %v204, 0
    %v428 = vsel %vm81, %v205, 0
    %v431 = vsel %vm81, %v206, 0
    %v434 = vsel %vm81, %v207, 0
    %v437 = vsel %vm81, %v208, 0
    %v440 = vsel %vm81, %v209, 0
    %442 = vmatpush.xpose.msra.mxu0 %v440
    %443 = vmatpush.xpose.msra.mxu0 %v437
    %444 = vmatpush.xpose.msra.mxu0 %v434
    %445 = vmatpush.xpose.msra.mxu0 %v431
    %446 = vmatpush.xpose.msra.mxu0 %v428
    %447 = vmatpush.xpose.msra.mxu0 %v425
    %448 = vmatpush.xpose.msra.mxu0 %v422
    %449 = vmatpush.xpose.msra.mxu0 %v419
    %450 = vmatpush.xpose.msra.mxu0 %v416
    %451 = vmatpush.xpose.msra.mxu0 %v413
    %452 = vmatpush.xpose.msra.mxu0 %v410
    %453 = vmatpush.xpose.msra.mxu0 %v407
    %454 = vmatpush.xpose.msra.mxu0 %v404
    %455 = vmatpush.xpose.msra.mxu0 %v401
    %456 = vmatpush.xpose.msra.mxu0 %v398
    %457 = vmatpush.xpose.msra.mxu0 %v395
    %458 = vmatmul.f32.gmra.mxu0 %v392
    %v459 = vpop.f32.mrf.mxu0
    %v460 = vadd.f32 0.0, %v459
    %461 = vdwg.mxu0
    %v462 = vmul.f32 %v48, %v316
    %v463 = vmul.f32 %v48, %v319
    %v464 = vsub.f32 %v389, %v462
    %v465 = vsub.f32 %v460, %v463
    %v466 = vmul.f32 %v464, %v464
    %v467 = vmul.f32 %v465, %v465
    %468 = vadd.xlane.f32.xlu0 %v466
    %v469 = vpop.xlane.xlu0 %468
    %470 = vadd.xlane.f32.xlu0 %v467
    %v471 = vpop.xlane.xlu0 %470
    %v472 = vmax.f32 %v469, 1e-24
    %v473 = vmax.f32 %v471, 1e-24
    %v474 = vrsqrt.pop %v472
    %v475 = vmul.f32 %v474, %v472
    %v476 = vmul.f32 %v475, %v474
    %v477 = vmul.f32 0.5, %v476
    %v478 = vsub.f32 1.5, %v477
    %v479 = vmul.f32 %v474, %v478
    %vm480 = vweird.f32 %v472
    %vm481 = vweird.f32 %v474
    %vm482 = vmor %vm480, %vm481
    %v483 = vsel %vm482, %v474, %v479
    %v484 = vrsqrt.pop %v473
    %v485 = vmul.f32 %v484, %v473
    %v486 = vmul.f32 %v485, %v484
    %v487 = vmul.f32 0.5, %v486
    %v488 = vsub.f32 1.5, %v487
    %v489 = vmul.f32 %v484, %v488
    %vm490 = vweird.f32 %v473
    %vm491 = vweird.f32 %v484
    %vm492 = vmor %vm490, %vm491
    %v493 = vsel %vm492, %v484, %v489
    %v494 = vmul.f32 %v464, %v483
    %v495 = vmul.f32 %v465, %v493
    %v496 = vmul.f32 %v494, %v494
    %v497 = vmul.f32 %v495, %v495
    %498 = vadd.xlane.f32.xlu0 %v496
    %v499 = vpop.xlane.xlu0 %498
    %500 = vadd.xlane.f32.xlu0 %v497
    %v501 = vpop.xlane.xlu0 %500
    %v502 = vrot.slane %v499, 4
    %v503 = vadd.f32 %v499, %v502
    %v504 = vrot.slane %v503, 2
    %v505 = vadd.f32 %v503, %v504
    %v506 = vrot.slane %v505, 1
    %v507 = vadd.f32 %v505, %v506
    %v508 = vrot.slane %v501, 4
    %v509 = vadd.f32 %v501, %v508
    %v510 = vrot.slane %v509, 2
    %v511 = vadd.f32 %v509, %v510
    %v512 = vrot.slane %v511, 1
    %v513 = vadd.f32 %v511, %v512
    %v514 = vmax.f32 %v507, 1e-24
    %v515 = vmax.f32 %v513, 1e-24
    %v516 = vrsqrt.pop %v514
    %v517 = vmul.f32 %v516, %v514
    %v518 = vmul.f32 %v517, %v516
    %v519 = vmul.f32 0.5, %v518
    %v520 = vsub.f32 1.5, %v519
    %v521 = vmul.f32 %v516, %v520
    %vm522 = vweird.f32 %v514
    %vm523 = vweird.f32 %v516
    %vm524 = vmor %vm522, %vm523
    %v525 = vsel %vm524, %v516, %v521
    %v526 = vrsqrt.pop %v515
    %v527 = vmul.f32 %v526, %v515
    %v528 = vmul.f32 %v527, %v526
    %v529 = vmul.f32 0.5, %v528
    %v530 = vsub.f32 1.5, %v529
    %v531 = vmul.f32 %v526, %v530
    %vm532 = vweird.f32 %v515
    %vm533 = vweird.f32 %v526
    %vm534 = vmor %vm532, %vm533
    %v535 = vsel %vm534, %v526, %v531
    %v536 = vmul.f32 %v494, %v525
    %v537 = vmul.f32 %v495, %v535
    %538 = vst [vmem:[#allocation2] sm:$0xff] %v536
    %539 = vst [vmem:[#allocation2 + $0x8] sm:$0xff] %v537
    // Predicated region
    $region14: #{tpu_custom_call.1} parent=1 // pred_check
      _
    $region15: #{tpu_custom_call.1} parent=1 // pred_check_branch
      %541 = sbr.rel (0) target = $region17
    $region16: #{tpu_custom_call.1} parent=1 // pred_region
      %543 = vsyncadd [#allocation3], 0
      %s544 = sshll.u32 [#allocation2], 4
      %s545 = int_to_ptr.vmem [resolvable:$true] %s544
      %s546 = sshll.u32 %s3, 4
      %s547 = int_to_ptr.hbm [resolvable:$true] %s546
      %552 = dma.vmem_to_hbm [thread:$0]  %s545, 256, %s547, [#allocation3], 128, 128, 8
    $region17: #{tpu_custom_call.1} parent=1 // pred_fallthru
      _
    // Predicated region
    $region18: #{tpu_custom_call.1} parent=1 // pred_check
      _
    $region19: #{tpu_custom_call.1} parent=1 // pred_check_branch
      %554 = sbr.rel (0) target = $region21
    $region20: #{tpu_custom_call.1} parent=1 // pred_region
      %556 = dma.done [#allocation3], 256
    $region21: #{tpu_custom_call.1} parent=1 // pred_fallthru
      _
    %557 = vsyncpa [#allocation3], 1

</llo_original>
